<compile_context>
chip_gen: v6e
topology: v6e:2x2x1
jax: 0.10.0
libtpu: 0.0.40
codegen_flags: <defaults>
</compile_context>

<pallas_src>
import math
import functools

import jax
import jax.numpy as jnp
from jax.experimental import pallas as pl
from jax.experimental.pallas import tpu as pltpu


def _round_up(x, m):
    return (x + m - 1) // m * m


# ---------------------------------------------------------------------------
# Pallas kernel: APG forward for one batch tile.
# ---------------------------------------------------------------------------
def _apg_kernel(compute_dtype,
                x_ref, sc_ref,
                wg_ref, bg_ref,        # fused scene generator -> [wkk_flat | bkk]
                w_rep_ref, b_rep_ref,  # collapsed input -> repeated-k projection
                w2_ref, b2_ref,        # reduce + collapsed k -> output projection
                out_ref):
    # in-kernel cast (inputs stay f32 in HBM; VPU cast is free vs an XLA pass)
    x = x_ref[...].astype(compute_dtype)
    sc = sc_ref[...].astype(compute_dtype)

    # one MXU call produces [wkk_flat | bkk] per sample
    gen = jnp.dot(sc, wg_ref[...], preferred_element_type=jnp.float32) + bg_ref[...]
    # one MXU call produces out_pk repeated k times, padded with a ones block
    rep = jnp.dot(x, w_rep_ref[...], preferred_element_type=jnp.float32) + b_rep_ref[...]

    # per-sample (1,k)@(k,k) bmm == repeat * multiply * reduce; the reduce is
    # folded into w2, so one VPU multiply replaces the old unrolled loop
    prod = (rep * gen).astype(compute_dtype)

    out = jnp.dot(prod, w2_ref[...], preferred_element_type=jnp.float32) + b2_ref[...]

    # outer activation = relu
    out_ref[...] = jnp.maximum(out, 0.0).astype(out_ref.dtype)


# ---------------------------------------------------------------------------
# Offline parameter preparation (collapse / fuse / fold repeat+reduce / cast)
# ---------------------------------------------------------------------------
def _prepare_operands(params, k_dim, compute_dtype):
    # collapse the activation-free linear pairs (exact: inner_activation=None)
    w_npk = params["w_np"] @ params["w_pk"]                       # (in, k)
    b_npk = params["b_np"] @ params["w_pk"] + params["b_pk"]      # (1, k)
    w_kpm = params["w_kp"] @ params["w_pm"]                       # (k, out)
    b_kpm = params["b_kp"] @ params["w_pm"] + params["b_pm"]      # (1, out)
    out_dim = w_kpm.shape[1]

    # fuse the two scene generators: gen = sc@wg + bg -> [wkk_flat | bkk]
    wg = jnp.concatenate([params["wg_kk"], params["wg_bkk"]], axis=1)   # (S, k*k+k)
    bg = jnp.concatenate([params["bg_kk"], params["bg_bkk"]], axis=1)   # (1, k*k+k)

    # repeat-multiply-reduce restructure of the per-sample bmm:
    #   rep[:, i*k+j] = out_pk[:, i]   (repeat matrix folded offline)
    #   rep[:, kk+j]  = 1              (so bkk rides through the elementwise mul)
    #   prod = rep * gen ;  out_kk @ w_kpm == prod @ w2
    in_dim = w_npk.shape[0]
    w_rep = jnp.concatenate(
        [jnp.repeat(w_npk, k_dim, axis=1),
         jnp.zeros((in_dim, k_dim), w_npk.dtype)], axis=1)              # (in, k*k+k)
    b_rep = jnp.concatenate(
        [jnp.repeat(b_npk, k_dim, axis=1),
         jnp.ones((1, k_dim), b_npk.dtype)], axis=1)                    # (1, k*k+k)
    w2 = jnp.concatenate([jnp.tile(w_kpm, (k_dim, 1)), w_kpm], axis=0)  # (k*k+k, out)

    prepared = dict(
        wg=wg.astype(compute_dtype),
        bg=bg.astype(jnp.float32),
        w_rep=w_rep.astype(compute_dtype),
        b_rep=b_rep.astype(jnp.float32),
        w2=w2.astype(compute_dtype),
        b2=b_kpm.astype(jnp.float32),
    )
    return prepared, out_dim


# ---------------------------------------------------------------------------
# Wrapper
# ---------------------------------------------------------------------------
def apg_layer_pallas(inputs, scene_emb, params, k_dim, *,
                     block_b=2048, compute_dtype=jnp.bfloat16, out_dtype=None):
    """inputs: (B, input_dim) f32, scene_emb: (B, scene_emb_dim) f32
    -> (B, output_dim) in `out_dtype` (default bf16)."""
    B, in_dim = inputs.shape
    S = scene_emb.shape[1]
    if out_dtype is None:
        out_dtype = compute_dtype

    prepared, out_dim = _prepare_operands(params, k_dim, compute_dtype)

    in_bytes = jnp.dtype(inputs.dtype).itemsize
    sc_bytes = jnp.dtype(scene_emb.dtype).itemsize
    o_bytes = jnp.dtype(out_dtype).itemsize
    per_row_bytes = in_dim * in_bytes + S * sc_bytes + out_dim * o_bytes

    # batch tile: multiple of 16 sublanes (safe for bf16 output blocks),
    # bounded so double-buffered row traffic stays well inside VMEM.
    budget = 16 << 20
    tb_cap = max(16, (budget // (2 * per_row_bytes)) // 16 * 16)
    tb = max(16, min(_round_up(block_b, 16), tb_cap, _round_up(B, 16)))

    num_tiles = pl.cdiv(B, tb)   # partial edge block is masked by Pallas

    operands = (inputs, scene_emb,
                prepared["wg"], prepared["bg"],
                prepared["w_rep"], prepared["b_rep"],
                prepared["w2"], prepared["b2"])

    def row_spec(d):
        return pl.BlockSpec((tb, d), lambda i: (i, 0))

    def resident_spec(arr):
        # full array, constant block index -> DMA'd once, stays resident in VMEM
        return pl.BlockSpec(arr.shape, lambda i: (0, 0))

    in_specs = [row_spec(in_dim), row_spec(S)] + [resident_spec(a) for a in operands[2:]]
    out_spec = pl.BlockSpec((tb, out_dim), lambda i: (i, 0))

    weight_bytes = sum(int(a.size) * a.dtype.itemsize for a in operands[2:])
    tile_bytes = tb * per_row_bytes
    # explicit scoped-VMEM limit with headroom; 40 MiB ceiling is safe on
    # v5e/v6e (128 MiB VMEM) and v7x (64 MiB VMEM)
    vmem_limit = int(min(max(2 * weight_bytes + 4 * tile_bytes + (4 << 20), 16 << 20),
                         40 << 20))

    kkk = k_dim * k_dim + k_dim
    flops = 2 * B * (S * kkk            # fused generator matmul
                     + in_dim * kkk     # x @ w_rep
                     + kkk * out_dim)   # (rep*gen) @ w2
    flops += B * kkk                    # elementwise multiply
    bytes_accessed = B * per_row_bytes + weight_bytes

    out = pl.pallas_call(
        functools.partial(_apg_kernel, compute_dtype),
        out_shape=jax.ShapeDtypeStruct((B, out_dim), out_dtype),
        grid=(num_tiles,),
        in_specs=in_specs,
        out_specs=out_spec,
        compiler_params=pltpu.CompilerParams(
            dimension_semantics=("parallel",),
            vmem_limit_bytes=vmem_limit),
        cost_estimate=pl.CostEstimate(flops=int(flops), transcendentals=0,
                                      bytes_accessed=int(bytes_accessed)),
    )(*operands)

    return out


# ---------------------------------------------------------------------------
# References
# ---------------------------------------------------------------------------
def apg_layer_ref(inputs, scene_emb, params, k_dim):
    """Pure-f32 mirror of the PyTorch forward (the spec)."""
    wkk_flat = scene_emb @ params["wg_kk"] + params["bg_kk"]
    bkk = scene_emb @ params["wg_bkk"] + params["bg_bkk"]
    B = inputs.shape[0]
    wkk = wkk_flat.reshape(B, k_dim, k_dim)

    out_np = inputs @ params["w_np"] + params["b_np"]
    out_pk = out_np @ params["w_pk"] + params["b_pk"]
    out_kk = jnp.einsum("bk,bkj->bj", out_pk, wkk) + bkk
    out_kp = out_kk @ params["w_kp"] + params["b_kp"]
    out_pm = out_kp @ params["w_pm"] + params["b_pm"]
    return jnp.maximum(out_pm, 0.0)


def apg_layer_kernel_math_ref(inputs, scene_emb, params, k_dim,
                              compute_dtype=jnp.bfloat16, out_dtype=None):
    """Plain-JAX mirror of exactly the fused/collapsed bf16 math the kernel does."""
    if out_dtype is None:
        out_dtype = compute_dtype
    prepared, out_dim = _prepare_operands(params, k_dim, compute_dtype)
    x = inputs.astype(compute_dtype)
    sc = scene_emb.astype(compute_dtype)

    gen = jnp.dot(sc, prepared["wg"], preferred_element_type=jnp.float32) + prepared["bg"]
    rep = jnp.dot(x, prepared["w_rep"], preferred_element_type=jnp.float32) + prepared["b_rep"]
    prod = (rep * gen).astype(compute_dtype)
    out = jnp.dot(prod, prepared["w2"], preferred_element_type=jnp.float32) + prepared["b2"]
    return jnp.maximum(out, 0.0).astype(out_dtype)[:, :out_dim]


# ---------------------------------------------------------------------------
# Deterministic parameter construction (xavier-uniform-ish, zero biases)
# ---------------------------------------------------------------------------
def _xavier(key, shape):
    fan_in, fan_out = shape[0], shape[1]
    bound = math.sqrt(6.0 / (fan_in + fan_out))
    return jax.random.uniform(key, shape, jnp.float32, -bound, bound)


def make_params(key, input_dim, output_dim, scene_emb_dim, mf_k, mf_p):
    min_dim = min(input_dim, output_dim)
    p_dim = math.ceil(float(min_dim) / float(mf_p))
    k_dim = math.ceil(float(min_dim) / float(mf_k))

    ks = jax.random.split(key, 6)
    params = {
        # scene-specific generators (single linear each, generate_activation=None)
        "wg_kk": _xavier(ks[0], (scene_emb_dim, k_dim * k_dim)),
        "bg_kk": jnp.zeros((1, k_dim * k_dim), jnp.float32),
        "wg_bkk": _xavier(ks[1], (scene_emb_dim, k_dim)),
        "bg_bkk": jnp.zeros((1, k_dim), jnp.float32),
        # shared U/V factors
        "w_np": _xavier(ks[2], (input_dim, p_dim)),
        "b_np": jnp.zeros((1, p_dim), jnp.float32),
        "w_pk": _xavier(ks[3], (p_dim, k_dim)),
        "b_pk": jnp.zeros((1, k_dim), jnp.float32),
        "w_kp": _xavier(ks[4], (k_dim, p_dim)),
        "b_kp": jnp.zeros((1, p_dim), jnp.float32),
        "w_pm": _xavier(ks[5], (p_dim, output_dim)),
        "b_pm": jnp.zeros((1, output_dim), jnp.float32),
    }
    return params, p_dim, k_dim


if __name__ == "__main__":
    # Small, forward-consistent shapes; B deliberately not a multiple of the
    # batch tile to exercise the multi-step grid + masked partial edge block.
    B = 20
    INPUT_DIM = 32
    OUTPUT_DIM = 16
    SCENE_EMB_DIM = 8
    MF_K, MF_P = 4, 2   # -> min_dim=16, k_dim=4, p_dim=8

    root = jax.random.PRNGKey(0)
    k_in, k_scene, k_par = jax.random.split(root, 3)

    inputs = jax.random.normal(k_in, (B, INPUT_DIM), jnp.float32)
    scene_emb = jax.random.normal(k_scene, (B, SCENE_EMB_DIM), jnp.float32)
    params, p_dim, k_dim = make_params(k_par, INPUT_DIM, OUTPUT_DIM,
                                       SCENE_EMB_DIM, MF_K, MF_P)

    # small block_b so the demo runs a multi-step grid (2 tiles of 16 rows,
    # second one partial/masked)
    out = apg_layer_pallas(inputs, scene_emb, params, k_dim, block_b=16)
    out = jax.block_until_ready(out)
    assert out.shape == (B, OUTPUT_DIM)

    # tight check vs the identical fused/collapsed bf16 math in plain JAX
    # (tolerance covers one bf16 ulp of output quantization)
    ref_same = apg_layer_kernel_math_ref(inputs, scene_emb, params, k_dim)
    assert jnp.allclose(out.astype(jnp.float32), ref_same.astype(jnp.float32),
                        atol=1e-2, rtol=1e-2), "mismatch vs same-precision reference"

    # loose check vs the f32 mirror of the PyTorch forward (bf16-level tolerance)
    ref_f32 = apg_layer_ref(inputs, scene_emb, params, k_dim)
    assert jnp.allclose(out.astype(jnp.float32), ref_f32,
                        atol=1e-1, rtol=1e-1), "mismatch vs f32 spec reference"

    print("KERNEL_OK")
</pallas_src>

<mosaic_0001>
module attributes {stable_mosaic.version = 11 : i64} {
  func.func @_apg_kernel(%arg0: i32, %arg1: memref<16x32xf32, #tpu.memory_space<vmem>>, %arg2: memref<16x8xf32, #tpu.memory_space<vmem>>, %arg3: memref<8x20xbf16, #tpu.memory_space<vmem>>, %arg4: memref<1x20xf32, #tpu.memory_space<vmem>>, %arg5: memref<32x20xbf16, #tpu.memory_space<vmem>>, %arg6: memref<1x20xf32, #tpu.memory_space<vmem>>, %arg7: memref<20x16xbf16, #tpu.memory_space<vmem>>, %arg8: memref<1x16xf32, #tpu.memory_space<vmem>>, %arg9: memref<16x16xbf16, #tpu.memory_space<vmem>>) attributes {dimension_semantics = [#tpu.dimension_semantics<parallel>], iteration_bounds = array<i64: 2>, scalar_prefetch = 0 : i64, scratch_operands = 0 : i64, tpu.core_type = #tpu.core_type<tc>, window_params = [{transform_indices = @transform_0, window_bounds = array<i64: 16, 32>}, {transform_indices = @transform_1, window_bounds = array<i64: 16, 8>}, {pipeline_mode = #tpu.pipeline_mode<synchronous>, transform_indices = @transform_2, window_bounds = array<i64: 8, 20>}, {pipeline_mode = #tpu.pipeline_mode<synchronous>, transform_indices = @transform_3, window_bounds = array<i64: 1, 20>}, {pipeline_mode = #tpu.pipeline_mode<synchronous>, transform_indices = @transform_4, window_bounds = array<i64: 32, 20>}, {pipeline_mode = #tpu.pipeline_mode<synchronous>, transform_indices = @transform_5, window_bounds = array<i64: 1, 20>}, {pipeline_mode = #tpu.pipeline_mode<synchronous>, transform_indices = @transform_6, window_bounds = array<i64: 20, 16>}, {pipeline_mode = #tpu.pipeline_mode<synchronous>, transform_indices = @transform_7, window_bounds = array<i64: 1, 16>}, {transform_indices = @transform_8, window_bounds = array<i64: 16, 16>}]} {
    %c0 = arith.constant 0 : index
    %c0_0 = arith.constant 0 : index
    %0 = vector.load %arg1[%c0, %c0_0] : memref<16x32xf32, #tpu.memory_space<vmem>>, vector<16x32xf32>
    %1 = arith.truncf %0 : vector<16x32xf32> to vector<16x32xbf16>
    %c0_1 = arith.constant 0 : index
    %c0_2 = arith.constant 0 : index
    %2 = vector.load %arg2[%c0_1, %c0_2] : memref<16x8xf32, #tpu.memory_space<vmem>>, vector<16x8xf32>
    %3 = arith.truncf %2 : vector<16x8xf32> to vector<16x8xbf16>
    %c0_3 = arith.constant 0 : index
    %c0_4 = arith.constant 0 : index
    %4 = vector.load %arg3[%c0_3, %c0_4] : memref<8x20xbf16, #tpu.memory_space<vmem>>, vector<8x20xbf16>
    %cst = arith.constant dense<0.000000e+00> : vector<16x20xf32>
    %5 = tpu.matmul %3, %4, %cst {dimension_numbers = #tpu.dot_dimension_numbers<[1], [0], [0], [1], [0, 0, 1, 1], [], []>} : vector<16x8xbf16>, vector<8x20xbf16>, vector<16x20xf32> -> vector<16x20xf32>
    %c0_5 = arith.constant 0 : index
    %c0_6 = arith.constant 0 : index
    %6 = vector.load %arg4[%c0_5, %c0_6] : memref<1x20xf32, #tpu.memory_space<vmem>>, vector<1x20xf32>
    %7 = vector.broadcast %6 : vector<1x20xf32> to vector<16x20xf32>
    %8 = arith.addf %5, %7 : vector<16x20xf32>
    %c0_7 = arith.constant 0 : index
    %c0_8 = arith.constant 0 : index
    %9 = vector.load %arg5[%c0_7, %c0_8] : memref<32x20xbf16, #tpu.memory_space<vmem>>, vector<32x20xbf16>
    %cst_9 = arith.constant dense<0.000000e+00> : vector<16x20xf32>
    %10 = tpu.matmul %1, %9, %cst_9 {dimension_numbers = #tpu.dot_dimension_numbers<[1], [0], [0], [1], [0, 0, 1, 1], [], []>} : vector<16x32xbf16>, vector<32x20xbf16>, vector<16x20xf32> -> vector<16x20xf32>
    %c0_10 = arith.constant 0 : index
    %c0_11 = arith.constant 0 : index
    %11 = vector.load %arg6[%c0_10, %c0_11] : memref<1x20xf32, #tpu.memory_space<vmem>>, vector<1x20xf32>
    %12 = vector.broadcast %11 : vector<1x20xf32> to vector<16x20xf32>
    %13 = arith.addf %10, %12 : vector<16x20xf32>
    %14 = arith.mulf %13, %8 : vector<16x20xf32>
    %15 = arith.truncf %14 : vector<16x20xf32> to vector<16x20xbf16>
    %c0_12 = arith.constant 0 : index
    %c0_13 = arith.constant 0 : index
    %16 = vector.load %arg7[%c0_12, %c0_13] : memref<20x16xbf16, #tpu.memory_space<vmem>>, vector<20x16xbf16>
    %cst_14 = arith.constant dense<0.000000e+00> : vector<16x16xf32>
    %17 = tpu.matmul %15, %16, %cst_14 {dimension_numbers = #tpu.dot_dimension_numbers<[1], [0], [0], [1], [0, 0, 1, 1], [], []>} : vector<16x20xbf16>, vector<20x16xbf16>, vector<16x16xf32> -> vector<16x16xf32>
    %c0_15 = arith.constant 0 : index
    %c0_16 = arith.constant 0 : index
    %18 = vector.load %arg8[%c0_15, %c0_16] : memref<1x16xf32, #tpu.memory_space<vmem>>, vector<1x16xf32>
    %19 = vector.broadcast %18 : vector<1x16xf32> to vector<16x16xf32>
    %20 = arith.addf %17, %19 : vector<16x16xf32>
    %cst_17 = arith.constant 0.000000e+00 : f32
    %21 = vector.broadcast %cst_17 : f32 to vector<16x16xf32>
    %22 = arith.maximumf %20, %21 : vector<16x16xf32>
    %23 = arith.truncf %22 : vector<16x16xf32> to vector<16x16xbf16>
    %c0_18 = arith.constant 0 : index
    %c0_19 = arith.constant 0 : index
    %24 = vector.load %arg9[%c0_18, %c0_19] : memref<16x16xbf16, #tpu.memory_space<vmem>>, vector<16x16xbf16>
    tpu.vector_store %arg9[%c0_18, %c0_19], %23 {strides = array<i32>} : memref<16x16xbf16, #tpu.memory_space<vmem>>, vector<16x16xbf16>,
    return
  }
  func.func @transform_0(%arg0: i32) -> (i32, i32) {
    %c0_i32 = arith.constant 0 : i32
    %c0_i32_0 = arith.constant 0 : i32
    return %arg0, %c0_i32 : i32, i32
  }
  func.func @transform_1(%arg0: i32) -> (i32, i32) {
    %c0_i32 = arith.constant 0 : i32
    %c0_i32_0 = arith.constant 0 : i32
    return %arg0, %c0_i32 : i32, i32
  }
  func.func @transform_2(%arg0: i32) -> (i32, i32) {
    %c0_i32 = arith.constant 0 : i32
    %c0_i32_0 = arith.constant 0 : i32
    %c0_i32_1 = arith.constant 0 : i32
    return %c0_i32, %c0_i32_0 : i32, i32
  }
  func.func @transform_3(%arg0: i32) -> (i32, i32) {
    %c0_i32 = arith.constant 0 : i32
    %c0_i32_0 = arith.constant 0 : i32
    %c0_i32_1 = arith.constant 0 : i32
    return %c0_i32, %c0_i32_0 : i32, i32
  }
  func.func @transform_4(%arg0: i32) -> (i32, i32) {
    %c0_i32 = arith.constant 0 : i32
    %c0_i32_0 = arith.constant 0 : i32
    %c0_i32_1 = arith.constant 0 : i32
    return %c0_i32, %c0_i32_0 : i32, i32
  }
  func.func @transform_5(%arg0: i32) -> (i32, i32) {
    %c0_i32 = arith.constant 0 : i32
    %c0_i32_0 = arith.constant 0 : i32
    %c0_i32_1 = arith.constant 0 : i32
    return %c0_i32, %c0_i32_0 : i32, i32
  }
  func.func @transform_6(%arg0: i32) -> (i32, i32) {
    %c0_i32 = arith.constant 0 : i32
    %c0_i32_0 = arith.constant 0 : i32
    %c0_i32_1 = arith.constant 0 : i32
    return %c0_i32, %c0_i32_0 : i32, i32
  }
  func.func @transform_7(%arg0: i32) -> (i32, i32) {
    %c0_i32 = arith.constant 0 : i32
    %c0_i32_0 = arith.constant 0 : i32
    %c0_i32_1 = arith.constant 0 : i32
    return %c0_i32, %c0_i32_0 : i32, i32
  }
  func.func @transform_8(%arg0: i32) -> (i32, i32) {
    %c0_i32 = arith.constant 0 : i32
    %c0_i32_0 = arith.constant 0 : i32
    return %arg0, %c0_i32 : i32, i32
  }
}

</mosaic_0001>

<llo_original>
// kernel: tpu_custom_call.1
$region0: #{tpu_custom_call.1}
  #allocation0 [shape = 'u32[]', space=smem, size = 0x4, offset = 0x4, fixed_abs, tag = 'smem constant byte address 0x4 - core index']
  #allocation1 [shape = 'u32[144,128]{1,0:T(1,128)}', space=vmem, size = 0x12000, scoped, tag = 'internal scratch']
  %s0 = inlined_call_operand.vmem [shape: f32[20,32], index: 0, kind: input, shape index: {}]
  %s1 = inlined_call_operand.vmem [shape: f32[20,8], index: 1, kind: input, shape index: {}]
  %s2 = inlined_call_operand.vmem [shape: bf16[8,20], index: 2, kind: input, shape index: {}]
  %s3 = inlined_call_operand.vmem [shape: f32[1,20], index: 3, kind: input, shape index: {}]
  %s4 = inlined_call_operand.vmem [shape: bf16[32,20], index: 4, kind: input, shape index: {}]
  %s5 = inlined_call_operand.vmem [shape: f32[1,20], index: 5, kind: input, shape index: {}]
  %s6 = inlined_call_operand.vmem [shape: bf16[20,16], index: 6, kind: input, shape index: {}]
  %s7 = inlined_call_operand.vmem [shape: f32[1,16], index: 7, kind: input, shape index: {}]
  %s8 = inlined_call_operand.vmem [shape: bf16[20,16], index: 8, kind: output, shape index: {}]
  %s9 = sld [smem:[#allocation0]]
  $region109: #{tpu_custom_call.1} parent=0
    _
  %s11 = ssub.s32 1, %s9
  %s12 = scalar_select 0, %s11, %s9
  $region1: #{tpu_custom_call.1} parent=0
    #allocation2 [shape = 'u8[8192]{0}', space=vmem, size = 0x2000, scoped, tag = 'output window, operand 0']
    loop: start=0, step=1, limit=4
    $region2: #{tpu_custom_call.1} parent=1 // loop_pre_header
      _
    $region3: #{tpu_custom_call.1} parent=1 // loop_header
      %s14 = sphi 0, %s18
      %p15 = scmp.ge.s32.totalorder %s14, 4
      %s24 = sphi 0, %s26
      %s27 = sphi 0, %s24
      %s28 = sphi 0, %s27
      %s44 = sphi 0, %s28
      %s50 = sphi 0, %s52
      %s53 = sphi 0, %s50
      %s54 = sphi 0, %s53
      %s70 = sphi 0, %s54
      %s74 = sphi 0, %s74
      %s76 = sphi 0, %s74
      %s77 = sphi 0, %s76
      %s91 = sphi 0, %s77
      %s95 = sphi 0, %s95
      %s97 = sphi 0, %s95
      %s98 = sphi 0, %s97
      %s112 = sphi 0, %s98
      %s116 = sphi 0, %s116
      %s118 = sphi 0, %s116
      %s119 = sphi 0, %s118
      %s133 = sphi 0, %s119
      %s137 = sphi 0, %s137
      %s139 = sphi 0, %s137
      %s140 = sphi 0, %s139
      %s154 = sphi 0, %s140
      %s158 = sphi 0, %s158
      %s160 = sphi 0, %s158
      %s161 = sphi 0, %s160
      %s175 = sphi 0, %s161
      %s179 = sphi 0, %s179
      %s181 = sphi 0, %s179
      %s182 = sphi 0, %s181
      %s196 = sphi 0, %s182
      %s202 = sphi 0, %s204
      %s205 = sphi 0, %s202
      %s206 = sphi 0, %s205
      %s222 = sphi 0, %s206
    $region4: #{tpu_custom_call.1} parent=1 // loop_header_branch
      %17 = sbr.rel (%p15) target = $region8
    $region5: #{tpu_custom_call.1} parent=1 // loop_body
      %s19 = ssub.s32 %s14, 1
      %s20 = ssub.s32 %s14, 2
      %s21 = sadd.s32 %s14, 1
      %s22 = ssub.s32 %s14, %s21
      %p23 = scmp.eq.s32.totalorder %s22, 0
      %s25 = sadd.s32 %s24, 1
      %s26 = scalar_select %p23, %s24, %s25
      %p29 = pneg %p23
      %p30 = scmp.eq.s32.totalorder %s14, 1
      %p31 = por %p29, %p30
      %p32 = scmp.ne.s32.totalorder %s24, %s27
      %p33 = scmp.eq.s32.totalorder %s14, 0
      %p34 = por %p32, %p33
      %p35 = scmp.ne.s32.totalorder %s24, %s27
      %p36 = scmp.eq.s32.totalorder %s19, 1
      %p37 = por %p35, %p36
      %p38 = scmp.ne.s32.totalorder %s27, %s28
      %p39 = scmp.eq.s32.totalorder %s19, 0
      %p40 = por %p38, %p39
      %p41 = scmp.ne.s32.totalorder %s27, %s28
      %p42 = scmp.eq.s32.totalorder %s20, 1
      %p43 = por %p41, %p42
      %p45 = scmp.ne.s32.totalorder %s28, %s44
      %p46 = scmp.eq.s32.totalorder %s20, 0
      %p47 = por %p45, %p46
      %s48 = ssub.s32 %s14, %s21
      %p49 = scmp.eq.s32.totalorder %s48, 0
      %s51 = sadd.s32 %s50, 1
      %s52 = scalar_select %p49, %s50, %s51
      %p55 = pneg %p49
      %p56 = scmp.eq.s32.totalorder %s14, 1
      %p57 = por %p55, %p56
      %p58 = scmp.ne.s32.totalorder %s50, %s53
      %p59 = scmp.eq.s32.totalorder %s14, 0
      %p60 = por %p58, %p59
      %p61 = scmp.ne.s32.totalorder %s50, %s53
      %p62 = scmp.eq.s32.totalorder %s19, 1
      %p63 = por %p61, %p62
      %p64 = scmp.ne.s32.totalorder %s53, %s54
      %p65 = scmp.eq.s32.totalorder %s19, 0
      %p66 = por %p64, %p65
      %p67 = scmp.ne.s32.totalorder %s53, %s54
      %p68 = scmp.eq.s32.totalorder %s20, 1
      %p69 = por %p67, %p68
      %p71 = scmp.ne.s32.totalorder %s54, %s70
      %p72 = scmp.eq.s32.totalorder %s20, 0
      %p73 = por %p71, %p72
      %s75 = sadd.s32 %s74, 1
      %p78 = scmp.eq.s32.totalorder %s14, 1
      %p79 = scmp.ne.s32.totalorder %s74, %s76
      %p80 = scmp.eq.s32.totalorder %s14, 0
      %p81 = por %p79, %p80
      %p82 = scmp.ne.s32.totalorder %s74, %s76
      %p83 = scmp.eq.s32.totalorder %s19, 1
      %p84 = por %p82, %p83
      %p85 = scmp.ne.s32.totalorder %s76, %s77
      %p86 = scmp.eq.s32.totalorder %s19, 0
      %p87 = por %p85, %p86
      %p88 = scmp.ne.s32.totalorder %s76, %s77
      %p89 = scmp.eq.s32.totalorder %s20, 1
      %p90 = por %p88, %p89
      %p92 = scmp.ne.s32.totalorder %s77, %s91
      %p93 = scmp.eq.s32.totalorder %s20, 0
      %p94 = por %p92, %p93
      %s96 = sadd.s32 %s95, 1
      %p99 = scmp.eq.s32.totalorder %s14, 1
      %p100 = scmp.ne.s32.totalorder %s95, %s97
      %p101 = scmp.eq.s32.totalorder %s14, 0
      %p102 = por %p100, %p101
      %p103 = scmp.ne.s32.totalorder %s95, %s97
      %p104 = scmp.eq.s32.totalorder %s19, 1
      %p105 = por %p103, %p104
      %p106 = scmp.ne.s32.totalorder %s97, %s98
      %p107 = scmp.eq.s32.totalorder %s19, 0
      %p108 = por %p106, %p107
      %p109 = scmp.ne.s32.totalorder %s97, %s98
      %p110 = scmp.eq.s32.totalorder %s20, 1
      %p111 = por %p109, %p110
      %p113 = scmp.ne.s32.totalorder %s98, %s112
      %p114 = scmp.eq.s32.totalorder %s20, 0
      %p115 = por %p113, %p114
      %s117 = sadd.s32 %s116, 1
      %p120 = scmp.eq.s32.totalorder %s14, 1
      %p121 = scmp.ne.s32.totalorder %s116, %s118
      %p122 = scmp.eq.s32.totalorder %s14, 0
      %p123 = por %p121, %p122
      %p124 = scmp.ne.s32.totalorder %s116, %s118
      %p125 = scmp.eq.s32.totalorder %s19, 1
      %p126 = por %p124, %p125
      %p127 = scmp.ne.s32.totalorder %s118, %s119
      %p128 = scmp.eq.s32.totalorder %s19, 0
      %p129 = por %p127, %p128
      %p130 = scmp.ne.s32.totalorder %s118, %s119
      %p131 = scmp.eq.s32.totalorder %s20, 1
      %p132 = por %p130, %p131
      %p134 = scmp.ne.s32.totalorder %s119, %s133
      %p135 = scmp.eq.s32.totalorder %s20, 0
      %p136 = por %p134, %p135
      %s138 = sadd.s32 %s137, 1
      %p141 = scmp.eq.s32.totalorder %s14, 1
      %p142 = scmp.ne.s32.totalorder %s137, %s139
      %p143 = scmp.eq.s32.totalorder %s14, 0
      %p144 = por %p142, %p143
      %p145 = scmp.ne.s32.totalorder %s137, %s139
      %p146 = scmp.eq.s32.totalorder %s19, 1
      %p147 = por %p145, %p146
      %p148 = scmp.ne.s32.totalorder %s139, %s140
      %p149 = scmp.eq.s32.totalorder %s19, 0
      %p150 = por %p148, %p149
      %p151 = scmp.ne.s32.totalorder %s139, %s140
      %p152 = scmp.eq.s32.totalorder %s20, 1
      %p153 = por %p151, %p152
      %p155 = scmp.ne.s32.totalorder %s140, %s154
      %p156 = scmp.eq.s32.totalorder %s20, 0
      %p157 = por %p155, %p156
      %s159 = sadd.s32 %s158, 1
      %p162 = scmp.eq.s32.totalorder %s14, 1
      %p163 = scmp.ne.s32.totalorder %s158, %s160
      %p164 = scmp.eq.s32.totalorder %s14, 0
      %p165 = por %p163, %p164
      %p166 = scmp.ne.s32.totalorder %s158, %s160
      %p167 = scmp.eq.s32.totalorder %s19, 1
      %p168 = por %p166, %p167
      %p169 = scmp.ne.s32.totalorder %s160, %s161
      %p170 = scmp.eq.s32.totalorder %s19, 0
      %p171 = por %p169, %p170
      %p172 = scmp.ne.s32.totalorder %s160, %s161
      %p173 = scmp.eq.s32.totalorder %s20, 1
      %p174 = por %p172, %p173
      %p176 = scmp.ne.s32.totalorder %s161, %s175
      %p177 = scmp.eq.s32.totalorder %s20, 0
      %p178 = por %p176, %p177
      %s180 = sadd.s32 %s179, 1
      %p183 = scmp.eq.s32.totalorder %s14, 1
      %p184 = scmp.ne.s32.totalorder %s179, %s181
      %p185 = scmp.eq.s32.totalorder %s14, 0
      %p186 = por %p184, %p185
      %p187 = scmp.ne.s32.totalorder %s179, %s181
      %p188 = scmp.eq.s32.totalorder %s19, 1
      %p189 = por %p187, %p188
      %p190 = scmp.ne.s32.totalorder %s181, %s182
      %p191 = scmp.eq.s32.totalorder %s19, 0
      %p192 = por %p190, %p191
      %p193 = scmp.ne.s32.totalorder %s181, %s182
      %p194 = scmp.eq.s32.totalorder %s20, 1
      %p195 = por %p193, %p194
      %p197 = scmp.ne.s32.totalorder %s182, %s196
      %p198 = scmp.eq.s32.totalorder %s20, 0
      %p199 = por %p197, %p198
      %s200 = ssub.s32 %s14, %s21
      %p201 = scmp.eq.s32.totalorder %s200, 0
      %s203 = sadd.s32 %s202, 1
      %s204 = scalar_select %p201, %s202, %s203
      %p207 = pneg %p201
      %p208 = scmp.eq.s32.totalorder %s14, 1
      %p209 = por %p207, %p208
      %p210 = scmp.ne.s32.totalorder %s202, %s205
      %p211 = scmp.eq.s32.totalorder %s14, 0
      %p212 = por %p210, %p211
      %p213 = scmp.ne.s32.totalorder %s202, %s205
      %p214 = scmp.eq.s32.totalorder %s19, 1
      %p215 = por %p213, %p214
      %p216 = scmp.ne.s32.totalorder %s205, %s206
      %p217 = scmp.eq.s32.totalorder %s19, 0
      %p218 = por %p216, %p217
      %p219 = scmp.ne.s32.totalorder %s205, %s206
      %p220 = scmp.eq.s32.totalorder %s20, 1
      %p221 = por %p219, %p220
      %p223 = scmp.ne.s32.totalorder %s206, %s222
      %p224 = scmp.eq.s32.totalorder %s20, 0
      %p225 = por %p223, %p224
      %p226 = scmp.le.s32.totalorder 1, %s14
      %p227 = scmp.lt.s32.totalorder %s14, 3
      %p228 = pnand %p226, %p227
      %p229 = pneg %p228
      // Predicated region
      $region9: #{tpu_custom_call.1} parent=5 // pred_check
        _
      $region10: #{tpu_custom_call.1} parent=5 // pred_check_branch
        %231 = sbr.rel (%p228) target = $region12
      $region11: #{tpu_custom_call.1} parent=5 // pred_region
        %s232 = ssub.s32 %s14, 1
        // Predicated region
        $region13: #{tpu_custom_call.1} parent=11 // pred_check
          %p233 = pneg %p87
        $region14: #{tpu_custom_call.1} parent=11 // pred_check_branch
          %235 = sbr.rel (%p233) target = $region16
        $region15: #{tpu_custom_call.1} parent=11 // pred_region
          _
        $region16: #{tpu_custom_call.1} parent=11 // pred_fallthru
          _
        // Predicated region
        $region17: #{tpu_custom_call.1} parent=11 // pred_check
          %p236 = pneg %p108
        $region18: #{tpu_custom_call.1} parent=11 // pred_check_branch
          %238 = sbr.rel (%p236) target = $region20
        $region19: #{tpu_custom_call.1} parent=11 // pred_region
          _
        $region20: #{tpu_custom_call.1} parent=11 // pred_fallthru
          _
        // Predicated region
        $region21: #{tpu_custom_call.1} parent=11 // pred_check
          %p239 = pneg %p129
        $region22: #{tpu_custom_call.1} parent=11 // pred_check_branch
          %241 = sbr.rel (%p239) target = $region24
        $region23: #{tpu_custom_call.1} parent=11 // pred_region
          _
        $region24: #{tpu_custom_call.1} parent=11 // pred_fallthru
          _
        // Predicated region
        $region25: #{tpu_custom_call.1} parent=11 // pred_check
          %p242 = pneg %p150
        $region26: #{tpu_custom_call.1} parent=11 // pred_check_branch
          %244 = sbr.rel (%p242) target = $region28
        $region27: #{tpu_custom_call.1} parent=11 // pred_region
          _
        $region28: #{tpu_custom_call.1} parent=11 // pred_fallthru
          _
        // Predicated region
        $region29: #{tpu_custom_call.1} parent=11 // pred_check
          %p245 = pneg %p171
        $region30: #{tpu_custom_call.1} parent=11 // pred_check_branch
          %247 = sbr.rel (%p245) target = $region32
        $region31: #{tpu_custom_call.1} parent=11 // pred_region
          _
        $region32: #{tpu_custom_call.1} parent=11 // pred_fallthru
          _
        // Predicated region
        $region33: #{tpu_custom_call.1} parent=11 // pred_check
          %p248 = pneg %p192
        $region34: #{tpu_custom_call.1} parent=11 // pred_check_branch
          %250 = sbr.rel (%p248) target = $region36
        $region35: #{tpu_custom_call.1} parent=11 // pred_region
          _
        $region36: #{tpu_custom_call.1} parent=11 // pred_fallthru
          _
      $region12: #{tpu_custom_call.1} parent=5 // pred_fallthru
        _
      %p251 = scmp.lt.s32.totalorder %s14, 2
      // Predicated region
      $region37: #{tpu_custom_call.1} parent=5 // pred_check
        %p252 = pneg %p251
      $region38: #{tpu_custom_call.1} parent=5 // pred_check_branch
        %254 = sbr.rel (%p252) target = $region40
      $region39: #{tpu_custom_call.1} parent=5 // pred_region
        // Predicated region
        $region41: #{tpu_custom_call.1} parent=39 // pred_check
          %p255 = pneg %p34
        $region42: #{tpu_custom_call.1} parent=39 // pred_check_branch
          %257 = sbr.rel (%p255) target = $region44
        $region43: #{tpu_custom_call.1} parent=39 // pred_region
          %s258 = smul.u32 2, %s14
          %s259 = ssub.s32 3, %s258
          %p260 = scmp.lt.s32.totalorder %s259, 2
          %s261 = scalar_select %p260, %s259, 2
          %s262 = smul.u32 128, %s261
          %p263 = scmp.lt.s32.totalorder %s258, 2
          %s264 = scalar_select %p263, %s258, 2
          %s265 = smul.addr %s264, 8
          %s266 = scalar_lea.vmem %s0, %s265
          %s267 = smul.u32 2, %s14
          %s268 = ssub.s32 3, %s267
          %p269 = scmp.lt.s32.totalorder %s268, 2
          %s270 = scalar_select %p269, %s268, 2
          %s271 = smul.u32 128, %s270
        $region44: #{tpu_custom_call.1} parent=39 // pred_fallthru
          _
        // Predicated region
        $region45: #{tpu_custom_call.1} parent=39 // pred_check
          %p272 = pneg %p60
        $region46: #{tpu_custom_call.1} parent=39 // pred_check_branch
          %274 = sbr.rel (%p272) target = $region48
        $region47: #{tpu_custom_call.1} parent=39 // pred_region
          %s275 = smul.u32 2, %s14
          %s276 = ssub.s32 3, %s275
          %p277 = scmp.lt.s32.totalorder %s276, 2
          %s278 = scalar_select %p277, %s276, 2
          %s279 = smul.u32 128, %s278
          %p280 = scmp.lt.s32.totalorder %s275, 2
          %s281 = scalar_select %p280, %s275, 2
          %s282 = smul.addr %s281, 8
          %s283 = scalar_lea.vmem %s1, %s282
          %s284 = smul.u32 2, %s14
          %s285 = ssub.s32 3, %s284
          %p286 = scmp.lt.s32.totalorder %s285, 2
          %s287 = scalar_select %p286, %s285, 2
          %s288 = smul.u32 128, %s287
        $region48: #{tpu_custom_call.1} parent=39 // pred_fallthru
          _
      $region40: #{tpu_custom_call.1} parent=5 // pred_fallthru
        _
      %p289 = scmp.le.s32.totalorder 1, %s14
      %p290 = scmp.lt.s32.totalorder %s14, 3
      %p291 = pnand %p289, %p290
      %p292 = pneg %p291
      // Predicated region
      $region49: #{tpu_custom_call.1} parent=5 // pred_check
        _
      $region50: #{tpu_custom_call.1} parent=5 // pred_check_branch
        %294 = sbr.rel (%p291) target = $region52
      $region51: #{tpu_custom_call.1} parent=5 // pred_region
        %s295 = ssub.s32 %s14, 1
        %s296 = smul.u32 2, %s19
        %s297 = ssub.s32 3, %s296
        %p298 = scmp.lt.s32.totalorder %s297, 2
        %s299 = scalar_select %p298, %s297, 2
        %s300 = smul.u32 128, %s299
        %p301 = scmp.lt.s32.totalorder %s296, 2
        %s302 = scalar_select %p301, %s296, 2
        %s303 = smul.addr %s302, 8
        %s304 = scalar_lea.vmem %s0, %s303
        %p305 = pneg %p40
        %p306 = pneg %p37
        %s307 = smul.u32 2, %s19
        %s308 = ssub.s32 3, %s307
        %p309 = scmp.lt.s32.totalorder %s308, 2
        %s310 = scalar_select %p309, %s308, 2
        %s311 = smul.u32 128, %s310
        %p312 = scmp.lt.s32.totalorder %s307, 2
        %s313 = scalar_select %p312, %s307, 2
        %s314 = smul.addr %s313, 8
        %s315 = scalar_lea.vmem %s1, %s314
        %p316 = pneg %p66
        %p317 = pneg %p63
        %p318 = pneg %p87
        %p319 = pneg %p84
        %p320 = pneg %p108
        %p321 = pneg %p105
        %p322 = pneg %p129
        %p323 = pneg %p126
        %p324 = pneg %p150
        %p325 = pneg %p147
        %p326 = pneg %p171
        %p327 = pneg %p168
        %p328 = pneg %p192
        %p329 = pneg %p189
        %p330 = pneg %p218
        %p331 = pneg %p215
        %s332 = sand.u32 %s205, 1
        %s333 = sand.u32 %s205, 1
        %s334 = smul.addr %s333, 8
        %s335 = scalar_lea.vmem [#allocation2], %s334
        %s336 = smul.u32 2, %s19
        %s337 = ssub.s32 3, %s336
        %p338 = scmp.lt.s32.totalorder %s337, 2
        %s339 = scalar_select %p338, %s337, 2
        %s340 = smul.u32 128, %s339
        %p341 = scmp.lt.s32.totalorder %s336, 2
        %s342 = scalar_select %p341, %s336, 2
        %s343 = smul.addr %s342, 8
        %s344 = scalar_lea.vmem %s0, %s343
        %s345 = smul.u32 2, %s19
        %s346 = ssub.s32 3, %s345
        %p347 = scmp.lt.s32.totalorder %s346, 2
        %s348 = scalar_select %p347, %s346, 2
        %s349 = smul.u32 128, %s348
        %s350 = smul.u32 2, %s19
        %s351 = ssub.s32 3, %s350
        %p352 = scmp.lt.s32.totalorder %s351, 2
        %s353 = scalar_select %p352, %s351, 2
        %s354 = smul.u32 128, %s353
        %p355 = scmp.lt.s32.totalorder %s350, 2
        %s356 = scalar_select %p355, %s350, 2
        %s357 = smul.addr %s356, 8
        %s358 = scalar_lea.vmem %s1, %s357
        %s359 = smul.u32 2, %s19
        %s360 = ssub.s32 3, %s359
        %p361 = scmp.lt.s32.totalorder %s360, 2
        %s362 = scalar_select %p361, %s360, 2
        %s363 = smul.u32 128, %s362
        %s364 = smul.u32 2, %s19
        %s365 = ssub.s32 3, %s364
        %p366 = scmp.lt.s32.totalorder %s365, 2
        %s367 = scalar_select %p366, %s365, 2
        %s368 = smul.u32 64, %s367
        %v370 = vld [vmem:[%s344] sm:$0xff]
        %v371 = vld [vmem:[%s344 + $0x8] sm:$0xff]
        %v372 = vpack.c.bf16 %v371, %v370
        %v373 = vld [vmem:[%s358] sm:$0xff]
        %v374 = vld [vmem:[%s358 + $0x8] sm:$0xff]
        %v375 = vpack.c.bf16 %v374, %v373
        %v376 = vld [vmem:[%s2] sm:$0xf]
        %v377 = vld [vmem:[%s3] sm:$0x1]
        %v379 = vlaneseq
        %v380 = vshrl.u32 %v379, 7
        %v381 = vsub.s32 0, %v380
        %v382 = vrot.slane %v377, %v381
        %vm384 = vcmask 64512
        %v386 = vsel %vm384, %v375, 0
        %vm388 = vcmask 1043456
        %v390 = vsel %vm388, %v376, 0
        %392 = vmatprep.subr.bf16.mxu0 0
        %393 = vmatpush1.bf16.msra.mxu0 0
        %394 = vmatprep.subr.bf16.mxu0 0
        %395 = vmatpush1.bf16.msra.mxu0 0
        %396 = vmatprep.subr.bf16.mxu0 0
        %397 = vmatpush1.bf16.msra.mxu0 0
        %398 = vmatprep.subr.bf16.mxu0 0
        %399 = vmatpush1.bf16.msra.mxu0 0
        %400 = vmatprep.subr.bf16.mxu0 0
        %401 = vmatpush1.bf16.msra.mxu0 0
        %402 = vmatprep.subr.bf16.mxu0 0
        %403 = vmatpush1.bf16.msra.mxu0 0
        %404 = vmatprep.subr.bf16.mxu0 0
        %405 = vmatpush1.bf16.msra.mxu0 0
        %406 = vmatprep.subr.bf16.mxu0 0
        %407 = vmatpush1.bf16.msra.mxu0 %v390
        %408 = vmatprep.subr.bf16.mxu0 0
        %409 = vmatpush2.bf16.msra.mxu0 0
        %410 = vmatprep.subr.bf16.mxu0 0
        %411 = vmatpush2.bf16.msra.mxu0 0
        %412 = vmatprep.subr.bf16.mxu0 0
        %413 = vmatpush2.bf16.msra.mxu0 0
        %414 = vmatprep.subr.bf16.mxu0 0
        %415 = vmatpush2.bf16.msra.mxu0 0
        %416 = vmatprep.subr.bf16.mxu0 0
        %417 = vmatpush2.bf16.msra.mxu0 0
        %418 = vmatprep.subr.bf16.mxu0 0
        %419 = vmatpush2.bf16.msra.mxu0 0
        %420 = vmatprep.subr.bf16.mxu0 0
        %421 = vmatpush2.bf16.msra.mxu0 0
        %422 = vmatprep.subr.bf16.mxu0 0
        %423 = vmatpush2.bf16.msra.mxu0 0
        %424 = vmatprep.mubr.bf16.mxu0 0
        %425 = vmatmul.mubr.bf16.gmra.mxu0 %v386
        %v426 = vpop.f32.mrf.mxu0
        %v427 = vadd.f32 %v382, %v426
        %v428 = vpop.f32.mrf.mxu0
        %v429 = vpop.f32.mrf.mxu0
        %v430 = vadd.f32 %v382, %v429
        %v431 = vpop.f32.mrf.mxu0
        %432 = vdwg.mxu0
        %v433 = vld [vmem:[%s4] sm:$0xf]
        %v434 = vld [vmem:[%s4 + $0x4] sm:$0xf]
        %v435 = vld [vmem:[%s4 + $0x8] sm:$0xf]
        %v436 = vld [vmem:[%s4 + $0xc] sm:$0xf]
        %v437 = vld [vmem:[%s5] sm:$0x1]
        %v439 = vlaneseq
        %v440 = vshrl.u32 %v439, 7
        %v441 = vsub.s32 0, %v440
        %v442 = vrot.slane %v437, %v441
        %v448 = vunpack.c.l.b16 %v433
        %v449 = vunpack.c.l.b16 %v434
        %v450 = vunpack.c.l.b16 %v435
        %v451 = vunpack.c.l.b16 %v436
        %v452 = vpack.c.b16 %v449, %v448
        %v453 = vpack.c.b16 %v451, %v450
        %vm456 = vcmask 261120
        %v458 = vsel %vm456, %v372, 0
        %460 = vmatprep.subr.bf16.mxu0 0
        %461 = vmatpush1.bf16.msra.mxu0 0
        %462 = vmatprep.subr.bf16.mxu0 0
        %463 = vmatpush1.bf16.msra.mxu0 0
        %464 = vmatprep.subr.bf16.mxu0 0
        %465 = vmatpush1.bf16.msra.mxu0 0
        %466 = vmatprep.subr.bf16.mxu0 0
        %467 = vmatpush1.bf16.msra.mxu0 0
        %468 = vmatprep.subr.bf16.mxu0 0
        %469 = vmatpush1.bf16.msra.mxu0 0
        %470 = vmatprep.subr.bf16.mxu0 0
        %471 = vmatpush1.bf16.msra.mxu0 0
        %472 = vmatprep.subr.bf16.mxu0 0
        %473 = vmatpush1.bf16.msra.mxu0 %v453
        %474 = vmatprep.subr.bf16.mxu0 0
        %475 = vmatpush1.bf16.msra.mxu0 %v452
        %476 = vmatprep.subr.bf16.mxu0 0
        %477 = vmatpush2.bf16.msra.mxu0 0
        %478 = vmatprep.subr.bf16.mxu0 0
        %479 = vmatpush2.bf16.msra.mxu0 0
        %480 = vmatprep.subr.bf16.mxu0 0
        %481 = vmatpush2.bf16.msra.mxu0 0
        %482 = vmatprep.subr.bf16.mxu0 0
        %483 = vmatpush2.bf16.msra.mxu0 0
        %484 = vmatprep.subr.bf16.mxu0 0
        %485 = vmatpush2.bf16.msra.mxu0 0
        %486 = vmatprep.subr.bf16.mxu0 0
        %487 = vmatpush2.bf16.msra.mxu0 0
        %488 = vmatprep.subr.bf16.mxu0 0
        %489 = vmatpush2.bf16.msra.mxu0 0
        %490 = vmatprep.subr.bf16.mxu0 0
        %491 = vmatpush2.bf16.msra.mxu0 0
        %492 = vmatprep.mubr.bf16.mxu0 0
        %493 = vmatmul.mubr.bf16.gmra.mxu0 %v458
        %v494 = vpop.f32.mrf.mxu0
        %v495 = vadd.f32 %v442, %v494
        %v496 = vpop.f32.mrf.mxu0
        %v497 = vpop.f32.mrf.mxu0
        %v498 = vadd.f32 %v442, %v497
        %v499 = vpop.f32.mrf.mxu0
        %500 = vdwg.mxu0
        %v501 = vmul.f32 %v495, %v427
        %v502 = vmul.f32 %v498, %v430
        %v503 = vpack.c.bf16 %v502, %v501
        %v504 = vld [vmem:[%s6] sm:$0xf]
        %v505 = vld [vmem:[%s6 + $0x4] sm:$0xf]
        %v506 = vld [vmem:[%s6 + $0x8] sm:$0x3]
        %v507 = vld [vmem:[%s7] sm:$0x1]
        %v509 = vlaneseq
        %v510 = vshrl.u32 %v509, 7
        %v511 = vsub.s32 0, %v510
        %v512 = vrot.slane %v507, %v511
        %v517 = vunpack.c.l.b16 %v504
        %v518 = vunpack.c.l.b16 %v505
        %v519 = vunpack.c.l.b16 %v506
        %v520 = vpack.c.b16 %v518, %v517
        %v521 = vpack.c.b16 %v519, %v519
        %vm523 = vcmask 162816
        %v525 = vsel %vm523, %v503, 0
        %vm527 = vcmask 1041408
        %v529 = vsel %vm527, %v521, 0
        %531 = vmatprep.subr.bf16.mxu0 0
        %532 = vmatpush1.bf16.msra.mxu0 0
        %533 = vmatprep.subr.bf16.mxu0 0
        %534 = vmatpush1.bf16.msra.mxu0 0
        %535 = vmatprep.subr.bf16.mxu0 0
        %536 = vmatpush1.bf16.msra.mxu0 0
        %537 = vmatprep.subr.bf16.mxu0 0
        %538 = vmatpush1.bf16.msra.mxu0 0
        %539 = vmatprep.subr.bf16.mxu0 0
        %540 = vmatpush1.bf16.msra.mxu0 0
        %541 = vmatprep.subr.bf16.mxu0 0
        %542 = vmatpush1.bf16.msra.mxu0 0
        %543 = vmatprep.subr.bf16.mxu0 0
        %544 = vmatpush1.bf16.msra.mxu0 %v529
        %545 = vmatprep.subr.bf16.mxu0 0
        %546 = vmatpush1.bf16.msra.mxu0 %v520
        %547 = vmatprep.subr.bf16.mxu0 0
        %548 = vmatpush2.bf16.msra.mxu0 0
        %549 = vmatprep.subr.bf16.mxu0 0
        %550 = vmatpush2.bf16.msra.mxu0 0
        %551 = vmatprep.subr.bf16.mxu0 0
        %552 = vmatpush2.bf16.msra.mxu0 0
        %553 = vmatprep.subr.bf16.mxu0 0
        %554 = vmatpush2.bf16.msra.mxu0 0
        %555 = vmatprep.subr.bf16.mxu0 0
        %556 = vmatpush2.bf16.msra.mxu0 0
        %557 = vmatprep.subr.bf16.mxu0 0
        %558 = vmatpush2.bf16.msra.mxu0 0
        %559 = vmatprep.subr.bf16.mxu0 0
        %560 = vmatpush2.bf16.msra.mxu0 0
        %561 = vmatprep.subr.bf16.mxu0 0
        %562 = vmatpush2.bf16.msra.mxu0 0
        %563 = vmatprep.mubr.bf16.mxu0 0
        %564 = vmatmul.mubr.bf16.gmra.mxu0 %v525
        %v565 = vpop.f32.mrf.mxu0
        %v566 = vadd.f32 %v512, %v565
        %v567 = vpop.f32.mrf.mxu0
        %v568 = vpop.f32.mrf.mxu0
        %v569 = vadd.f32 %v512, %v568
        %v570 = vpop.f32.mrf.mxu0
        %571 = vdwg.mxu0
        %v572 = vmax.f32 %v566, 0.0
        %v573 = vmax.f32 %v569, 0.0
        %v574 = vpack.c.bf16 %v573, %v572
        %v576 = vunpack.c.l.b16 %v574
        %v577 = vunpack.c.h.b16 %v574
        %v578 = vpack.c.b16 %v576, %v576
        %v579 = vpack.c.b16 %v577, %v577
        %vm582 = vcmask 125952
        %583 = vst.msk [vmem:[%s335] sm:$0xf] %vm582, %v578
        %584 = vst.msk [vmem:[%s335 + $0x4] sm:$0xf] %vm582, %v579
        %s585 = sand.u32 %s205, 1
        %s586 = sand.u32 %s205, 1
        %s587 = smul.addr %s586, 8
        %s588 = scalar_lea.vmem [#allocation2], %s587
        // Predicated region
        $region53: #{tpu_custom_call.1} parent=51 // pred_check
          %p589 = pneg %p215
        $region54: #{tpu_custom_call.1} parent=51 // pred_check_branch
          %591 = sbr.rel (%p589) target = $region56
        $region55: #{tpu_custom_call.1} parent=51 // pred_region
          %s592 = smul.u32 2, %s19
          %s593 = ssub.s32 3, %s592
          %p594 = scmp.lt.s32.totalorder %s593, 2
          %s595 = scalar_select %p594, %s593, 2
          %s596 = smul.u32 64, %s595
          %p597 = scmp.ne.s32.totalorder 0, %s596
          %s598 = smul.addr %s592, 4
          %s599 = scalar_lea.vmem %s8, %s598
          // Predicated region
          $region57: #{tpu_custom_call.1} parent=55 // pred_check
            %p600 = pneg %p597
          $region58: #{tpu_custom_call.1} parent=55 // pred_check_branch
            %602 = sbr.rel (%p600) target = $region60
          $region59: #{tpu_custom_call.1} parent=55 // pred_region
            // Predicated region
            $region61: #{tpu_custom_call.1} parent=59 // pred_check
              _
            $region62: #{tpu_custom_call.1} parent=59 // pred_check_branch
              %604 = sbr.rel target = $region64
            $region63: #{tpu_custom_call.1} parent=59 // pred_region
              // Predicated region
              $region83: #{tpu_custom_call.1} parent=63 // pred_check
                _
              $region84: #{tpu_custom_call.1} parent=63 // pred_check_branch
                %656 = sbr.rel (0) target = $region86
              $region85: #{tpu_custom_call.1} parent=63 // pred_region
                %s658 = ssub.s32 16, 1
                %s659 = sshrl.u32 %s595, 1
                // While loop
                $region87: #{tpu_custom_call.1} parent=85 // loop_pre_header
                  _
                $region88: #{tpu_custom_call.1} parent=85 // loop_header
                  %s661 = sphi 0, %s663
                  %p662 = scmp.ge.s32.totalorder %s661, %s659
                  %s666 = sphi 0, %s675
                  %s667 = sphi %s588, %s678
                  %s668 = sphi %s599, %s679
                $region89: #{tpu_custom_call.1} parent=85 // loop_header_branch
                  %665 = sbr.rel (%p662) target = $region93
                $region90: #{tpu_custom_call.1} parent=85 // loop_body
                  %v669 = vld [vmem:[%s667] sm:%s658]
                  %670 = vst [vmem:[%s668] sm:%s658] %v669
                  %v671 = vld [vmem:[%s667 + $0x4] sm:%s658]
                  %672 = vst [vmem:[%s668 + $0x4] sm:%s658] %v671
                  %s673 = sadd.s32 1, %s666
                  %p674 = scmp.ge.s32.totalorder %s673, %s659
                  %s675 = scalar_select %p674, 0, %s673
                  %s676 = smul.u32 %s675, 8
                  %s677 = smul.u32 %s675, 8
                  %s678 = scalar_lea.vmem %s588, %s676 [#allocation2]
                  %s679 = scalar_lea.vmem %s599, %s677
                $region91: #{tpu_custom_call.1} parent=85 // loop_footer
                  %s663 = sadd.s32 %s661, 1
                $region92: #{tpu_custom_call.1} parent=85 // loop_footer_branch
                  %660 = sbr.rel target = $region88
                $region93: #{tpu_custom_call.1} parent=85 // loop_exit
                  _
                %s680 = sshrl.u32 %s595, 1
                %s681 = sand.u32 %s595, 1
                %s682 = smul.u32 %s680, 2
                %s683 = smul.u32 4, %s682
                %s684 = scalar_lea.vmem %s588, %s683 [#allocation2]
                %s685 = smul.u32 4, %s682
                %s686 = scalar_lea.vmem %s599, %s685
                // While loop
                $region94: #{tpu_custom_call.1} parent=85 // loop_pre_header
                  _
                $region95: #{tpu_custom_call.1} parent=85 // loop_header
                  %s688 = sphi 0, %s690
                  %p689 = scmp.ge.s32.totalorder %s688, %s681
                  %s693 = sphi 0, %s700
                  %s694 = sphi %s684, %s703
                  %s695 = sphi %s686, %s704
                $region96: #{tpu_custom_call.1} parent=85 // loop_header_branch
                  %692 = sbr.rel (%p689) target = $region100
                $region97: #{tpu_custom_call.1} parent=85 // loop_body
                  %v696 = vld [vmem:[%s694] sm:%s658]
                  %697 = vst [vmem:[%s695] sm:%s658] %v696
                  %s698 = sadd.s32 1, %s693
                  %p699 = scmp.ge.s32.totalorder %s698, %s681
                  %s700 = scalar_select %p699, 0, %s698
                  %s701 = smul.u32 %s700, 4
                  %s702 = smul.u32 %s700, 4
                  %s703 = scalar_lea.vmem %s684, %s701 [#allocation2]
                  %s704 = scalar_lea.vmem %s686, %s702
                $region98: #{tpu_custom_call.1} parent=85 // loop_footer
                  %s690 = sadd.s32 %s688, 1
                $region99: #{tpu_custom_call.1} parent=85 // loop_footer_branch
                  %687 = sbr.rel target = $region95
                $region100: #{tpu_custom_call.1} parent=85 // loop_exit
                  _
              $region86: #{tpu_custom_call.1} parent=63 // pred_fallthru
                _
            $region64: #{tpu_custom_call.1} parent=59 // pred_fallthru
              _
            // Predicated region
            $region65: #{tpu_custom_call.1} parent=59 // pred_check
              _
            $region66: #{tpu_custom_call.1} parent=59 // pred_check_branch
              %606 = sbr.rel (0) target = $region68
            $region67: #{tpu_custom_call.1} parent=59 // pred_region
              %s608 = ssub.s32 16, 1
              %s609 = sshrl.u32 %s595, 1
              // While loop
              $region69: #{tpu_custom_call.1} parent=67 // loop_pre_header
                _
              $region70: #{tpu_custom_call.1} parent=67 // loop_header
                %s611 = sphi 0, %s613
                %p612 = scmp.ge.s32.totalorder %s611, %s609
                %s616 = sphi 0, %s625
                %s617 = sphi %s588, %s628
                %s618 = sphi %s599, %s629
              $region71: #{tpu_custom_call.1} parent=67 // loop_header_branch
                %615 = sbr.rel (%p612) target = $region75
              $region72: #{tpu_custom_call.1} parent=67 // loop_body
                %v619 = vld [vmem:[%s617] sm:%s608]
                %620 = vst [vmem:[%s618] sm:%s608] %v619
                %v621 = vld [vmem:[%s617 + $0x4] sm:%s608]
                %622 = vst [vmem:[%s618 + $0x4] sm:%s608] %v621
                %s623 = sadd.s32 1, %s616
                %p624 = scmp.ge.s32.totalorder %s623, %s609
                %s625 = scalar_select %p624, 0, %s623
                %s626 = smul.u32 %s625, 8
                %s627 = smul.u32 %s625, 8
                %s628 = scalar_lea.vmem %s588, %s626 [#allocation2]
                %s629 = scalar_lea.vmem %s599, %s627
              $region73: #{tpu_custom_call.1} parent=67 // loop_footer
                %s613 = sadd.s32 %s611, 1
              $region74: #{tpu_custom_call.1} parent=67 // loop_footer_branch
                %610 = sbr.rel target = $region70
              $region75: #{tpu_custom_call.1} parent=67 // loop_exit
                _
              %s630 = sshrl.u32 %s595, 1
              %s631 = sand.u32 %s595, 1
              %s632 = smul.u32 %s630, 2
              %s633 = smul.u32 4, %s632
              %s634 = scalar_lea.vmem %s588, %s633 [#allocation2]
              %s635 = smul.u32 4, %s632
              %s636 = scalar_lea.vmem %s599, %s635
              // While loop
              $region76: #{tpu_custom_call.1} parent=67 // loop_pre_header
                _
              $region77: #{tpu_custom_call.1} parent=67 // loop_header
                %s638 = sphi 0, %s640
                %p639 = scmp.ge.s32.totalorder %s638, %s631
                %s643 = sphi 0, %s650
                %s644 = sphi %s634, %s653
                %s645 = sphi %s636, %s654
              $region78: #{tpu_custom_call.1} parent=67 // loop_header_branch
                %642 = sbr.rel (%p639) target = $region82
              $region79: #{tpu_custom_call.1} parent=67 // loop_body
                %v646 = vld [vmem:[%s644] sm:%s608]
                %647 = vst [vmem:[%s645] sm:%s608] %v646
                %s648 = sadd.s32 1, %s643
                %p649 = scmp.ge.s32.totalorder %s648, %s631
                %s650 = scalar_select %p649, 0, %s648
                %s651 = smul.u32 %s650, 4
                %s652 = smul.u32 %s650, 4
                %s653 = scalar_lea.vmem %s634, %s651 [#allocation2]
                %s654 = scalar_lea.vmem %s636, %s652
              $region80: #{tpu_custom_call.1} parent=67 // loop_footer
                %s640 = sadd.s32 %s638, 1
              $region81: #{tpu_custom_call.1} parent=67 // loop_footer_branch
                %637 = sbr.rel target = $region77
              $region82: #{tpu_custom_call.1} parent=67 // loop_exit
                _
            $region68: #{tpu_custom_call.1} parent=59 // pred_fallthru
              _
          $region60: #{tpu_custom_call.1} parent=55 // pred_fallthru
            _
          %705 = vnop
        $region56: #{tpu_custom_call.1} parent=51 // pred_fallthru
          _
      $region52: #{tpu_custom_call.1} parent=5 // pred_fallthru
        _
      %p706 = scmp.le.s32.totalorder 2, %s14
      // Predicated region
      $region101: #{tpu_custom_call.1} parent=5 // pred_check
        %p707 = pneg %p706
      $region102: #{tpu_custom_call.1} parent=5 // pred_check_branch
        %709 = sbr.rel (%p707) target = $region104
      $region103: #{tpu_custom_call.1} parent=5 // pred_region
        %s710 = ssub.s32 %s14, 2
        // Predicated region
        $region105: #{tpu_custom_call.1} parent=103 // pred_check
          %p711 = pneg %p221
        $region106: #{tpu_custom_call.1} parent=103 // pred_check_branch
          %713 = sbr.rel (%p711) target = $region108
        $region107: #{tpu_custom_call.1} parent=103 // pred_region
          %s714 = sand.u32 %s206, 1
          %s715 = sand.u32 %s206, 1
          %s716 = smul.addr %s715, 8
          %s717 = scalar_lea.vmem [#allocation2], %s716
        $region108: #{tpu_custom_call.1} parent=103 // pred_fallthru
          _
      $region104: #{tpu_custom_call.1} parent=5 // pred_fallthru
        _
    $region6: #{tpu_custom_call.1} parent=1 // loop_footer
      %s18 = sadd.s32 1, %s14
    $region7: #{tpu_custom_call.1} parent=1 // loop_footer_branch
      %13 = sbr.rel target = $region3
    $region8: #{tpu_custom_call.1} parent=1 // loop_exit
      _

</llo_original>
